<compile_context>
chip_gen: v5e
topology: v5e:2x2
jax: 0.10.0
libtpu: 0.0.40
codegen_flags: <defaults>
</compile_context>

<pallas_src>
import functools
import math

import jax
import jax.numpy as jnp
import numpy as np
from jax.experimental import pallas as pl
from jax.experimental.pallas import tpu as pltpu

_LANES = 128                              # vreg lane width
_DEFAULT_BLOCK_ROWS = 4096                # 4096 x 128 f32 = 2 MiB per block
_DEFAULT_WHOLE_ARRAY_LIMIT = 4 << 20      # 4 MiB padded-VMEM footprint


def _scale_kernel(w_ref, o_ref, *, c):
    """Elementwise o = w * c on the current VMEM tile."""
    o_ref[...] = w_ref[...] * c


def _padded_vmem_bytes(shape, dtype):
    """Rough VMEM footprint of `shape` after (sublane, lane) tile padding."""
    itemsize = jnp.dtype(dtype).itemsize
    sublane = 8 * max(1, 4 // itemsize)   # f32: 8, bf16: 16, int8/fp8: 32
    dims = tuple(int(d) for d in shape) if len(shape) else (1,)
    last = dims[-1]
    second = dims[-2] if len(dims) >= 2 else 1
    lead = int(np.prod(dims[:-2])) if len(dims) > 2 else 1
    padded_last = -(-last // _LANES) * _LANES
    padded_second = -(-second // sublane) * sublane
    return lead * padded_second * padded_last * itemsize


def _scale_whole_array(weight, c):
    """Single-block kernel: whole weight resident in VMEM, no grid."""
    return pl.pallas_call(
        functools.partial(_scale_kernel, c=c),
        out_shape=jax.ShapeDtypeStruct(weight.shape, weight.dtype),
    )(weight)


def _scale_tiled_2d(w2d, c, block_rows):
    """(rows, 128) lane-dense layout, tiled over rows in large blocks."""
    rows, lanes = w2d.shape
    br = block_rows if rows > block_rows else rows   # full dim if it fits
    grid = pl.cdiv(rows, br)
    return pl.pallas_call(
        functools.partial(_scale_kernel, c=c),
        out_shape=jax.ShapeDtypeStruct((rows, lanes), w2d.dtype),
        grid_spec=pltpu.PrefetchScalarGridSpec(
            num_scalar_prefetch=0,
            grid=(grid,),
            in_specs=[pl.BlockSpec((br, lanes), lambda i: (i, 0))],
            out_specs=pl.BlockSpec((br, lanes), lambda i: (i, 0)),
        ),
        compiler_params=pltpu.CompilerParams(
            dimension_semantics=("parallel",),   # elementwise -> megacore-friendly
        ),
    )(w2d)


def equalized_weight_forward(weight, *,
                             block_rows: int = _DEFAULT_BLOCK_ROWS,
                             whole_array_limit_bytes: int = _DEFAULT_WHOLE_ARRAY_LIMIT):
    """Pallas implementation of EqualizedWeight.forward().

    `weight` is the stored parameter w_hat of arbitrary shape; returns
    w_hat * c with c = 1 / sqrt(prod(shape[1:])), matching the PyTorch module.
    """
    shape = weight.shape
    c = 1.0 / math.sqrt(float(np.prod(shape[1:]))) if len(shape) > 1 else 1.0
    total = int(np.prod(shape)) if len(shape) else 1

    # Common case: small / medium weight -> one whole-array block, native
    # shape, zero wrapper-side data movement.
    if _padded_vmem_bytes(shape, weight.dtype) <= whole_array_limit_bytes:
        return _scale_whole_array(weight, c)

    if total % _LANES == 0:
        # Large, lane-divisible weight: free reshape to (rows, 128) and tile
        # over rows.  A ragged final row-block is masked by Pallas.
        rows = total // _LANES
        out2d = _scale_tiled_2d(weight.reshape(rows, _LANES), c, block_rows)
        return out2d.reshape(shape)

    # Rare fallback: large and not divisible by 128 -> pad to lane-dense rows.
    rows = -(-total // _LANES)
    flat = jnp.pad(weight.reshape(-1), (0, rows * _LANES - total))
    out2d = _scale_tiled_2d(flat.reshape(rows, _LANES), c, block_rows)
    return out2d.reshape(-1)[:total].reshape(shape)


def _reference(weight):
    """Pure-JAX mirror of EqualizedWeight.forward, for verification."""
    shape = weight.shape
    c = 1.0 / math.sqrt(float(np.prod(shape[1:]))) if len(shape) > 1 else 1.0
    return weight * c


if __name__ == "__main__":
    key = jax.random.PRNGKey(0)
    k1, k2, k3 = jax.random.split(key, 3)

    # 1) Typical conv-style EqualizedWeight([4, 32, 3, 3]) -> whole-array path.
    w1 = jax.random.normal(k1, (4, 32, 3, 3), dtype=jnp.float32)
    o1 = jax.block_until_ready(equalized_weight_forward(w1))
    assert o1.shape == w1.shape and o1.dtype == w1.dtype
    assert jnp.allclose(o1, _reference(w1), atol=1e-6, rtol=1e-6)

    # 2) Linear-style weight, forced through the tiled lane-dense path.
    w2 = jax.random.normal(k2, (1024, 256), dtype=jnp.float32)
    o2 = jax.block_until_ready(
        equalized_weight_forward(w2, block_rows=512, whole_array_limit_bytes=0))
    assert o2.shape == w2.shape and o2.dtype == w2.dtype
    assert jnp.allclose(o2, _reference(w2), atol=1e-6, rtol=1e-6)

    # 3) Odd, non-lane-divisible shape, forced through the padded fallback.
    w3 = jax.random.normal(k3, (5, 7, 3), dtype=jnp.float32)
    o3 = jax.block_until_ready(
        equalized_weight_forward(w3, whole_array_limit_bytes=0))
    assert o3.shape == w3.shape and o3.dtype == w3.dtype
    assert jnp.allclose(o3, _reference(w3), atol=1e-6, rtol=1e-6)

    print("KERNEL_OK")
</pallas_src>

<mosaic_0001>
module attributes {stable_mosaic.version = 11 : i64} {
  func.func @_scale_kernel(%arg0: memref<4x32x3x3xf32, #tpu.memory_space<vmem>>, %arg1: memref<4x32x3x3xf32, #tpu.memory_space<vmem>>) attributes {dimension_semantics = [], scalar_prefetch = 0 : i64, scratch_operands = 0 : i64, tpu.core_type = #tpu.core_type<tc>} {
    %c0 = arith.constant 0 : index
    %c0_0 = arith.constant 0 : index
    %c0_1 = arith.constant 0 : index
    %c0_2 = arith.constant 0 : index
    %0 = vector.load %arg0[%c0, %c0_0, %c0_1, %c0_2] : memref<4x32x3x3xf32, #tpu.memory_space<vmem>>, vector<4x32x3x3xf32>
    %cst = arith.constant 0.0589255653 : f32
    %1 = vector.broadcast %cst : f32 to vector<4x32x3x3xf32>
    %2 = arith.mulf %0, %1 : vector<4x32x3x3xf32>
    %c0_3 = arith.constant 0 : index
    %c0_4 = arith.constant 0 : index
    %c0_5 = arith.constant 0 : index
    %c0_6 = arith.constant 0 : index
    %3 = vector.load %arg1[%c0_3, %c0_4, %c0_5, %c0_6] : memref<4x32x3x3xf32, #tpu.memory_space<vmem>>, vector<4x32x3x3xf32>
    tpu.vector_store %arg1[%c0_3, %c0_4, %c0_5, %c0_6], %2 {strides = array<i32>} : memref<4x32x3x3xf32, #tpu.memory_space<vmem>>, vector<4x32x3x3xf32>,
    return
  }
}

</mosaic_0001>

<llo_original>
// kernel: tpu_custom_call.1
$region0: #{tpu_custom_call.1}
  #allocation0 [shape = 'u32[]', space=smem, size = 0x4, offset = 0x4, fixed_abs, tag = 'smem constant byte address 0x4 - core index']
  #allocation1 [shape = 'u32[72,128]{1,0:T(1,128)}', space=vmem, size = 0x9000, scoped, tag = 'internal scratch']
  %s0 = inlined_call_operand.vmem [shape: f32[4,32,3,3], index: 0, kind: input, shape index: {}]
  %s1 = inlined_call_operand.vmem [shape: f32[4,32,3,3], index: 1, kind: output, shape index: {}]
  %s2 = sld [smem:[#allocation0]]
  $region14: #{tpu_custom_call.1} parent=0
    _
  %s4 = ssub.s32 1, %s2
  %s5 = scalar_select 0, %s4, %s2
  // Predicated region
  $region2: #{tpu_custom_call.1} parent=0 // pred_check
    _
  $region3: #{tpu_custom_call.1} parent=0 // pred_check_branch
    %7 = sbr.rel (0) target = $region5
  $region4: #{tpu_custom_call.1} parent=0 // pred_region
    _
  $region5: #{tpu_custom_call.1} parent=0 // pred_fallthru
    _
  %v8 = vld [vmem:[%s0] sm:$0x7]
  %v9 = vld [vmem:[%s0 + $0x4] sm:$0x7]
  %v10 = vld [vmem:[%s0 + $0x8] sm:$0x7]
  %v11 = vld [vmem:[%s0 + $0xc] sm:$0x7]
  %v12 = vld [vmem:[%s0 + $0x10] sm:$0x7]
  %v13 = vld [vmem:[%s0 + $0x14] sm:$0x7]
  %v14 = vld [vmem:[%s0 + $0x18] sm:$0x7]
  %v15 = vld [vmem:[%s0 + $0x1c] sm:$0x7]
  %v16 = vld [vmem:[%s0 + $0x20] sm:$0x7]
  %v17 = vld [vmem:[%s0 + $0x24] sm:$0x7]
  %v18 = vld [vmem:[%s0 + $0x28] sm:$0x7]
  %v19 = vld [vmem:[%s0 + $0x2c] sm:$0x7]
  %v20 = vld [vmem:[%s0 + $0x30] sm:$0x7]
  %v21 = vld [vmem:[%s0 + $0x34] sm:$0x7]
  %v22 = vld [vmem:[%s0 + $0x38] sm:$0x7]
  %v23 = vld [vmem:[%s0 + $0x3c] sm:$0x7]
  %v24 = vld [vmem:[%s0 + $0x40] sm:$0x7]
  %v25 = vld [vmem:[%s0 + $0x44] sm:$0x7]
  %v26 = vld [vmem:[%s0 + $0x48] sm:$0x7]
  %v27 = vld [vmem:[%s0 + $0x4c] sm:$0x7]
  %v28 = vld [vmem:[%s0 + $0x50] sm:$0x7]
  %v29 = vld [vmem:[%s0 + $0x54] sm:$0x7]
  %v30 = vld [vmem:[%s0 + $0x58] sm:$0x7]
  %v31 = vld [vmem:[%s0 + $0x5c] sm:$0x7]
  %v32 = vld [vmem:[%s0 + $0x60] sm:$0x7]
  %v33 = vld [vmem:[%s0 + $0x64] sm:$0x7]
  %v34 = vld [vmem:[%s0 + $0x68] sm:$0x7]
  %v35 = vld [vmem:[%s0 + $0x6c] sm:$0x7]
  %v36 = vld [vmem:[%s0 + $0x70] sm:$0x7]
  %v37 = vld [vmem:[%s0 + $0x74] sm:$0x7]
  %v38 = vld [vmem:[%s0 + $0x78] sm:$0x7]
  %v39 = vld [vmem:[%s0 + $0x7c] sm:$0x7]
  %v40 = vld [vmem:[%s0 + $0x80] sm:$0x7]
  %v41 = vld [vmem:[%s0 + $0x84] sm:$0x7]
  %v42 = vld [vmem:[%s0 + $0x88] sm:$0x7]
  %v43 = vld [vmem:[%s0 + $0x8c] sm:$0x7]
  %v44 = vld [vmem:[%s0 + $0x90] sm:$0x7]
  %v45 = vld [vmem:[%s0 + $0x94] sm:$0x7]
  %v46 = vld [vmem:[%s0 + $0x98] sm:$0x7]
  %v47 = vld [vmem:[%s0 + $0x9c] sm:$0x7]
  %v48 = vld [vmem:[%s0 + $0xa0] sm:$0x7]
  %v49 = vld [vmem:[%s0 + $0xa4] sm:$0x7]
  %v50 = vld [vmem:[%s0 + $0xa8] sm:$0x7]
  %v51 = vld [vmem:[%s0 + $0xac] sm:$0x7]
  %v52 = vld [vmem:[%s0 + $0xb0] sm:$0x7]
  %v53 = vld [vmem:[%s0 + $0xb4] sm:$0x7]
  %v54 = vld [vmem:[%s0 + $0xb8] sm:$0x7]
  %v55 = vld [vmem:[%s0 + $0xbc] sm:$0x7]
  %v56 = vld [vmem:[%s0 + $0xc0] sm:$0x7]
  %v57 = vld [vmem:[%s0 + $0xc4] sm:$0x7]
  %v58 = vld [vmem:[%s0 + $0xc8] sm:$0x7]
  %v59 = vld [vmem:[%s0 + $0xcc] sm:$0x7]
  %v60 = vld [vmem:[%s0 + $0xd0] sm:$0x7]
  %v61 = vld [vmem:[%s0 + $0xd4] sm:$0x7]
  %v62 = vld [vmem:[%s0 + $0xd8] sm:$0x7]
  %v63 = vld [vmem:[%s0 + $0xdc] sm:$0x7]
  %v64 = vld [vmem:[%s0 + $0xe0] sm:$0x7]
  %v65 = vld [vmem:[%s0 + $0xe4] sm:$0x7]
  %v66 = vld [vmem:[%s0 + $0xe8] sm:$0x7]
  %v67 = vld [vmem:[%s0 + $0xec] sm:$0x7]
  %v68 = vld [vmem:[%s0 + $0xf0] sm:$0x7]
  %v69 = vld [vmem:[%s0 + $0xf4] sm:$0x7]
  %v70 = vld [vmem:[%s0 + $0xf8] sm:$0x7]
  %v71 = vld [vmem:[%s0 + $0xfc] sm:$0x7]
  %v72 = vld [vmem:[%s0 + $0x100] sm:$0x7]
  %v73 = vld [vmem:[%s0 + $0x104] sm:$0x7]
  %v74 = vld [vmem:[%s0 + $0x108] sm:$0x7]
  %v75 = vld [vmem:[%s0 + $0x10c] sm:$0x7]
  %v76 = vld [vmem:[%s0 + $0x110] sm:$0x7]
  %v77 = vld [vmem:[%s0 + $0x114] sm:$0x7]
  %v78 = vld [vmem:[%s0 + $0x118] sm:$0x7]
  %v79 = vld [vmem:[%s0 + $0x11c] sm:$0x7]
  %v80 = vld [vmem:[%s0 + $0x120] sm:$0x7]
  %v81 = vld [vmem:[%s0 + $0x124] sm:$0x7]
  %v82 = vld [vmem:[%s0 + $0x128] sm:$0x7]
  %v83 = vld [vmem:[%s0 + $0x12c] sm:$0x7]
  %v84 = vld [vmem:[%s0 + $0x130] sm:$0x7]
  %v85 = vld [vmem:[%s0 + $0x134] sm:$0x7]
  %v86 = vld [vmem:[%s0 + $0x138] sm:$0x7]
  %v87 = vld [vmem:[%s0 + $0x13c] sm:$0x7]
  %v88 = vld [vmem:[%s0 + $0x140] sm:$0x7]
  %v89 = vld [vmem:[%s0 + $0x144] sm:$0x7]
  %v90 = vld [vmem:[%s0 + $0x148] sm:$0x7]
  %v91 = vld [vmem:[%s0 + $0x14c] sm:$0x7]
  %v92 = vld [vmem:[%s0 + $0x150] sm:$0x7]
  %v93 = vld [vmem:[%s0 + $0x154] sm:$0x7]
  %v94 = vld [vmem:[%s0 + $0x158] sm:$0x7]
  %v95 = vld [vmem:[%s0 + $0x15c] sm:$0x7]
  %v96 = vld [vmem:[%s0 + $0x160] sm:$0x7]
  %v97 = vld [vmem:[%s0 + $0x164] sm:$0x7]
  %v98 = vld [vmem:[%s0 + $0x168] sm:$0x7]
  %v99 = vld [vmem:[%s0 + $0x16c] sm:$0x7]
  %v100 = vld [vmem:[%s0 + $0x170] sm:$0x7]
  %v101 = vld [vmem:[%s0 + $0x174] sm:$0x7]
  %v102 = vld [vmem:[%s0 + $0x178] sm:$0x7]
  %v103 = vld [vmem:[%s0 + $0x17c] sm:$0x7]
  %v104 = vld [vmem:[%s0 + $0x180] sm:$0x7]
  %v105 = vld [vmem:[%s0 + $0x184] sm:$0x7]
  %v106 = vld [vmem:[%s0 + $0x188] sm:$0x7]
  %v107 = vld [vmem:[%s0 + $0x18c] sm:$0x7]
  %v108 = vld [vmem:[%s0 + $0x190] sm:$0x7]
  %v109 = vld [vmem:[%s0 + $0x194] sm:$0x7]
  %v110 = vld [vmem:[%s0 + $0x198] sm:$0x7]
  %v111 = vld [vmem:[%s0 + $0x19c] sm:$0x7]
  %v112 = vld [vmem:[%s0 + $0x1a0] sm:$0x7]
  %v113 = vld [vmem:[%s0 + $0x1a4] sm:$0x7]
  %v114 = vld [vmem:[%s0 + $0x1a8] sm:$0x7]
  %v115 = vld [vmem:[%s0 + $0x1ac] sm:$0x7]
  %v116 = vld [vmem:[%s0 + $0x1b0] sm:$0x7]
  %v117 = vld [vmem:[%s0 + $0x1b4] sm:$0x7]
  %v118 = vld [vmem:[%s0 + $0x1b8] sm:$0x7]
  %v119 = vld [vmem:[%s0 + $0x1bc] sm:$0x7]
  %v120 = vld [vmem:[%s0 + $0x1c0] sm:$0x7]
  %v121 = vld [vmem:[%s0 + $0x1c4] sm:$0x7]
  %v122 = vld [vmem:[%s0 + $0x1c8] sm:$0x7]
  %v123 = vld [vmem:[%s0 + $0x1cc] sm:$0x7]
  %v124 = vld [vmem:[%s0 + $0x1d0] sm:$0x7]
  %v125 = vld [vmem:[%s0 + $0x1d4] sm:$0x7]
  %v126 = vld [vmem:[%s0 + $0x1d8] sm:$0x7]
  %v127 = vld [vmem:[%s0 + $0x1dc] sm:$0x7]
  %v128 = vld [vmem:[%s0 + $0x1e0] sm:$0x7]
  %v129 = vld [vmem:[%s0 + $0x1e4] sm:$0x7]
  %v130 = vld [vmem:[%s0 + $0x1e8] sm:$0x7]
  %v131 = vld [vmem:[%s0 + $0x1ec] sm:$0x7]
  %v132 = vld [vmem:[%s0 + $0x1f0] sm:$0x7]
  %v133 = vld [vmem:[%s0 + $0x1f4] sm:$0x7]
  %v134 = vld [vmem:[%s0 + $0x1f8] sm:$0x7]
  %v135 = vld [vmem:[%s0 + $0x1fc] sm:$0x7]
  %v136 = vmul.f32 %v8, 0.058925565
  %v137 = vmul.f32 %v9, 0.058925565
  %v138 = vmul.f32 %v10, 0.058925565
  %v139 = vmul.f32 %v11, 0.058925565
  %v140 = vmul.f32 %v12, 0.058925565
  %v141 = vmul.f32 %v13, 0.058925565
  %v142 = vmul.f32 %v14, 0.058925565
  %v143 = vmul.f32 %v15, 0.058925565
  %v144 = vmul.f32 %v16, 0.058925565
  %v145 = vmul.f32 %v17, 0.058925565
  %v146 = vmul.f32 %v18, 0.058925565
  %v147 = vmul.f32 %v19, 0.058925565
  %v148 = vmul.f32 %v20, 0.058925565
  %v149 = vmul.f32 %v21, 0.058925565
  %v150 = vmul.f32 %v22, 0.058925565
  %v151 = vmul.f32 %v23, 0.058925565
  %v152 = vmul.f32 %v24, 0.058925565
  %v153 = vmul.f32 %v25, 0.058925565
  %v154 = vmul.f32 %v26, 0.058925565
  %v155 = vmul.f32 %v27, 0.058925565
  %v156 = vmul.f32 %v28, 0.058925565
  %v157 = vmul.f32 %v29, 0.058925565
  %v158 = vmul.f32 %v30, 0.058925565
  %v159 = vmul.f32 %v31, 0.058925565
  %v160 = vmul.f32 %v32, 0.058925565
  %v161 = vmul.f32 %v33, 0.058925565
  %v162 = vmul.f32 %v34, 0.058925565
  %v163 = vmul.f32 %v35, 0.058925565
  %v164 = vmul.f32 %v36, 0.058925565
  %v165 = vmul.f32 %v37, 0.058925565
  %v166 = vmul.f32 %v38, 0.058925565
  %v167 = vmul.f32 %v39, 0.058925565
  %v168 = vmul.f32 %v40, 0.058925565
  %v169 = vmul.f32 %v41, 0.058925565
  %v170 = vmul.f32 %v42, 0.058925565
  %v171 = vmul.f32 %v43, 0.058925565
  %v172 = vmul.f32 %v44, 0.058925565
  %v173 = vmul.f32 %v45, 0.058925565
  %v174 = vmul.f32 %v46, 0.058925565
  %v175 = vmul.f32 %v47, 0.058925565
  %v176 = vmul.f32 %v48, 0.058925565
  %v177 = vmul.f32 %v49, 0.058925565
  %v178 = vmul.f32 %v50, 0.058925565
  %v179 = vmul.f32 %v51, 0.058925565
  %v180 = vmul.f32 %v52, 0.058925565
  %v181 = vmul.f32 %v53, 0.058925565
  %v182 = vmul.f32 %v54, 0.058925565
  %v183 = vmul.f32 %v55, 0.058925565
  %v184 = vmul.f32 %v56, 0.058925565
  %v185 = vmul.f32 %v57, 0.058925565
  %v186 = vmul.f32 %v58, 0.058925565
  %v187 = vmul.f32 %v59, 0.058925565
  %v188 = vmul.f32 %v60, 0.058925565
  %v189 = vmul.f32 %v61, 0.058925565
  %v190 = vmul.f32 %v62, 0.058925565
  %v191 = vmul.f32 %v63, 0.058925565
  %v192 = vmul.f32 %v64, 0.058925565
  %v193 = vmul.f32 %v65, 0.058925565
  %v194 = vmul.f32 %v66, 0.058925565
  %v195 = vmul.f32 %v67, 0.058925565
  %v196 = vmul.f32 %v68, 0.058925565
  %v197 = vmul.f32 %v69, 0.058925565
  %v198 = vmul.f32 %v70, 0.058925565
  %v199 = vmul.f32 %v71, 0.058925565
  %v200 = vmul.f32 %v72, 0.058925565
  %v201 = vmul.f32 %v73, 0.058925565
  %v202 = vmul.f32 %v74, 0.058925565
  %v203 = vmul.f32 %v75, 0.058925565
  %v204 = vmul.f32 %v76, 0.058925565
  %v205 = vmul.f32 %v77, 0.058925565
  %v206 = vmul.f32 %v78, 0.058925565
  %v207 = vmul.f32 %v79, 0.058925565
  %v208 = vmul.f32 %v80, 0.058925565
  %v209 = vmul.f32 %v81, 0.058925565
  %v210 = vmul.f32 %v82, 0.058925565
  %v211 = vmul.f32 %v83, 0.058925565
  %v212 = vmul.f32 %v84, 0.058925565
  %v213 = vmul.f32 %v85, 0.058925565
  %v214 = vmul.f32 %v86, 0.058925565
  %v215 = vmul.f32 %v87, 0.058925565
  %v216 = vmul.f32 %v88, 0.058925565
  %v217 = vmul.f32 %v89, 0.058925565
  %v218 = vmul.f32 %v90, 0.058925565
  %v219 = vmul.f32 %v91, 0.058925565
  %v220 = vmul.f32 %v92, 0.058925565
  %v221 = vmul.f32 %v93, 0.058925565
  %v222 = vmul.f32 %v94, 0.058925565
  %v223 = vmul.f32 %v95, 0.058925565
  %v224 = vmul.f32 %v96, 0.058925565
  %v225 = vmul.f32 %v97, 0.058925565
  %v226 = vmul.f32 %v98, 0.058925565
  %v227 = vmul.f32 %v99, 0.058925565
  %v228 = vmul.f32 %v100, 0.058925565
  %v229 = vmul.f32 %v101, 0.058925565
  %v230 = vmul.f32 %v102, 0.058925565
  %v231 = vmul.f32 %v103, 0.058925565
  %v232 = vmul.f32 %v104, 0.058925565
  %v233 = vmul.f32 %v105, 0.058925565
  %v234 = vmul.f32 %v106, 0.058925565
  %v235 = vmul.f32 %v107, 0.058925565
  %v236 = vmul.f32 %v108, 0.058925565
  %v237 = vmul.f32 %v109, 0.058925565
  %v238 = vmul.f32 %v110, 0.058925565
  %v239 = vmul.f32 %v111, 0.058925565
  %v240 = vmul.f32 %v112, 0.058925565
  %v241 = vmul.f32 %v113, 0.058925565
  %v242 = vmul.f32 %v114, 0.058925565
  %v243 = vmul.f32 %v115, 0.058925565
  %v244 = vmul.f32 %v116, 0.058925565
  %v245 = vmul.f32 %v117, 0.058925565
  %v246 = vmul.f32 %v118, 0.058925565
  %v247 = vmul.f32 %v119, 0.058925565
  %v248 = vmul.f32 %v120, 0.058925565
  %v249 = vmul.f32 %v121, 0.058925565
  %v250 = vmul.f32 %v122, 0.058925565
  %v251 = vmul.f32 %v123, 0.058925565
  %v252 = vmul.f32 %v124, 0.058925565
  %v253 = vmul.f32 %v125, 0.058925565
  %v254 = vmul.f32 %v126, 0.058925565
  %v255 = vmul.f32 %v127, 0.058925565
  %v256 = vmul.f32 %v128, 0.058925565
  %v257 = vmul.f32 %v129, 0.058925565
  %v258 = vmul.f32 %v130, 0.058925565
  %v259 = vmul.f32 %v131, 0.058925565
  %v260 = vmul.f32 %v132, 0.058925565
  %v261 = vmul.f32 %v133, 0.058925565
  %v262 = vmul.f32 %v134, 0.058925565
  %v263 = vmul.f32 %v135, 0.058925565
  %vm264 = vcmask 18432
  %265 = vst.msk [vmem:[%s1] sm:$0x7] %vm264, %v136
  %266 = vst.msk [vmem:[%s1 + $0x4] sm:$0x7] %vm264, %v137
  %267 = vst.msk [vmem:[%s1 + $0x8] sm:$0x7] %vm264, %v138
  %268 = vst.msk [vmem:[%s1 + $0xc] sm:$0x7] %vm264, %v139
  %269 = vst.msk [vmem:[%s1 + $0x10] sm:$0x7] %vm264, %v140
  %270 = vst.msk [vmem:[%s1 + $0x14] sm:$0x7] %vm264, %v141
  %271 = vst.msk [vmem:[%s1 + $0x18] sm:$0x7] %vm264, %v142
  %272 = vst.msk [vmem:[%s1 + $0x1c] sm:$0x7] %vm264, %v143
  %273 = vst.msk [vmem:[%s1 + $0x20] sm:$0x7] %vm264, %v144
  %274 = vst.msk [vmem:[%s1 + $0x24] sm:$0x7] %vm264, %v145
  %275 = vst.msk [vmem:[%s1 + $0x28] sm:$0x7] %vm264, %v146
  %276 = vst.msk [vmem:[%s1 + $0x2c] sm:$0x7] %vm264, %v147
  %277 = vst.msk [vmem:[%s1 + $0x30] sm:$0x7] %vm264, %v148
  %278 = vst.msk [vmem:[%s1 + $0x34] sm:$0x7] %vm264, %v149
  %279 = vst.msk [vmem:[%s1 + $0x38] sm:$0x7] %vm264, %v150
  %280 = vst.msk [vmem:[%s1 + $0x3c] sm:$0x7] %vm264, %v151
  %281 = vst.msk [vmem:[%s1 + $0x40] sm:$0x7] %vm264, %v152
  %282 = vst.msk [vmem:[%s1 + $0x44] sm:$0x7] %vm264, %v153
  %283 = vst.msk [vmem:[%s1 + $0x48] sm:$0x7] %vm264, %v154
  %284 = vst.msk [vmem:[%s1 + $0x4c] sm:$0x7] %vm264, %v155
  %285 = vst.msk [vmem:[%s1 + $0x50] sm:$0x7] %vm264, %v156
  %286 = vst.msk [vmem:[%s1 + $0x54] sm:$0x7] %vm264, %v157
  %287 = vst.msk [vmem:[%s1 + $0x58] sm:$0x7] %vm264, %v158
  %288 = vst.msk [vmem:[%s1 + $0x5c] sm:$0x7] %vm264, %v159
  %289 = vst.msk [vmem:[%s1 + $0x60] sm:$0x7] %vm264, %v160
  %290 = vst.msk [vmem:[%s1 + $0x64] sm:$0x7] %vm264, %v161
  %291 = vst.msk [vmem:[%s1 + $0x68] sm:$0x7] %vm264, %v162
  %292 = vst.msk [vmem:[%s1 + $0x6c] sm:$0x7] %vm264, %v163
  %293 = vst.msk [vmem:[%s1 + $0x70] sm:$0x7] %vm264, %v164
  %294 = vst.msk [vmem:[%s1 + $0x74] sm:$0x7] %vm264, %v165
  %295 = vst.msk [vmem:[%s1 + $0x78] sm:$0x7] %vm264, %v166
  %296 = vst.msk [vmem:[%s1 + $0x7c] sm:$0x7] %vm264, %v167
  %297 = vst.msk [vmem:[%s1 + $0x80] sm:$0x7] %vm264, %v168
  %298 = vst.msk [vmem:[%s1 + $0x84] sm:$0x7] %vm264, %v169
  %299 = vst.msk [vmem:[%s1 + $0x88] sm:$0x7] %vm264, %v170
  %300 = vst.msk [vmem:[%s1 + $0x8c] sm:$0x7] %vm264, %v171
  %301 = vst.msk [vmem:[%s1 + $0x90] sm:$0x7] %vm264, %v172
  %302 = vst.msk [vmem:[%s1 + $0x94] sm:$0x7] %vm264, %v173
  %303 = vst.msk [vmem:[%s1 + $0x98] sm:$0x7] %vm264, %v174
  %304 = vst.msk [vmem:[%s1 + $0x9c] sm:$0x7] %vm264, %v175
  %305 = vst.msk [vmem:[%s1 + $0xa0] sm:$0x7] %vm264, %v176
  %306 = vst.msk [vmem:[%s1 + $0xa4] sm:$0x7] %vm264, %v177
  %307 = vst.msk [vmem:[%s1 + $0xa8] sm:$0x7] %vm264, %v178
  %308 = vst.msk [vmem:[%s1 + $0xac] sm:$0x7] %vm264, %v179
  %309 = vst.msk [vmem:[%s1 + $0xb0] sm:$0x7] %vm264, %v180
  %310 = vst.msk [vmem:[%s1 + $0xb4] sm:$0x7] %vm264, %v181
  %311 = vst.msk [vmem:[%s1 + $0xb8] sm:$0x7] %vm264, %v182
  %312 = vst.msk [vmem:[%s1 + $0xbc] sm:$0x7] %vm264, %v183
  %313 = vst.msk [vmem:[%s1 + $0xc0] sm:$0x7] %vm264, %v184
  %314 = vst.msk [vmem:[%s1 + $0xc4] sm:$0x7] %vm264, %v185
  %315 = vst.msk [vmem:[%s1 + $0xc8] sm:$0x7] %vm264, %v186
  %316 = vst.msk [vmem:[%s1 + $0xcc] sm:$0x7] %vm264, %v187
  %317 = vst.msk [vmem:[%s1 + $0xd0] sm:$0x7] %vm264, %v188
  %318 = vst.msk [vmem:[%s1 + $0xd4] sm:$0x7] %vm264, %v189
  %319 = vst.msk [vmem:[%s1 + $0xd8] sm:$0x7] %vm264, %v190
  %320 = vst.msk [vmem:[%s1 + $0xdc] sm:$0x7] %vm264, %v191
  %321 = vst.msk [vmem:[%s1 + $0xe0] sm:$0x7] %vm264, %v192
  %322 = vst.msk [vmem:[%s1 + $0xe4] sm:$0x7] %vm264, %v193
  %323 = vst.msk [vmem:[%s1 + $0xe8] sm:$0x7] %vm264, %v194
  %324 = vst.msk [vmem:[%s1 + $0xec] sm:$0x7] %vm264, %v195
  %325 = vst.msk [vmem:[%s1 + $0xf0] sm:$0x7] %vm264, %v196
  %326 = vst.msk [vmem:[%s1 + $0xf4] sm:$0x7] %vm264, %v197
  %327 = vst.msk [vmem:[%s1 + $0xf8] sm:$0x7] %vm264, %v198
  %328 = vst.msk [vmem:[%s1 + $0xfc] sm:$0x7] %vm264, %v199
  %329 = vst.msk [vmem:[%s1 + $0x100] sm:$0x7] %vm264, %v200
  %330 = vst.msk [vmem:[%s1 + $0x104] sm:$0x7] %vm264, %v201
  %331 = vst.msk [vmem:[%s1 + $0x108] sm:$0x7] %vm264, %v202
  %332 = vst.msk [vmem:[%s1 + $0x10c] sm:$0x7] %vm264, %v203
  %333 = vst.msk [vmem:[%s1 + $0x110] sm:$0x7] %vm264, %v204
  %334 = vst.msk [vmem:[%s1 + $0x114] sm:$0x7] %vm264, %v205
  %335 = vst.msk [vmem:[%s1 + $0x118] sm:$0x7] %vm264, %v206
  %336 = vst.msk [vmem:[%s1 + $0x11c] sm:$0x7] %vm264, %v207
  %337 = vst.msk [vmem:[%s1 + $0x120] sm:$0x7] %vm264, %v208
  %338 = vst.msk [vmem:[%s1 + $0x124] sm:$0x7] %vm264, %v209
  %339 = vst.msk [vmem:[%s1 + $0x128] sm:$0x7] %vm264, %v210
  %340 = vst.msk [vmem:[%s1 + $0x12c] sm:$0x7] %vm264, %v211
  %341 = vst.msk [vmem:[%s1 + $0x130] sm:$0x7] %vm264, %v212
  %342 = vst.msk [vmem:[%s1 + $0x134] sm:$0x7] %vm264, %v213
  %343 = vst.msk [vmem:[%s1 + $0x138] sm:$0x7] %vm264, %v214
  %344 = vst.msk [vmem:[%s1 + $0x13c] sm:$0x7] %vm264, %v215
  %345 = vst.msk [vmem:[%s1 + $0x140] sm:$0x7] %vm264, %v216
  %346 = vst.msk [vmem:[%s1 + $0x144] sm:$0x7] %vm264, %v217
  %347 = vst.msk [vmem:[%s1 + $0x148] sm:$0x7] %vm264, %v218
  %348 = vst.msk [vmem:[%s1 + $0x14c] sm:$0x7] %vm264, %v219
  %349 = vst.msk [vmem:[%s1 + $0x150] sm:$0x7] %vm264, %v220
  %350 = vst.msk [vmem:[%s1 + $0x154] sm:$0x7] %vm264, %v221
  %351 = vst.msk [vmem:[%s1 + $0x158] sm:$0x7] %vm264, %v222
  %352 = vst.msk [vmem:[%s1 + $0x15c] sm:$0x7] %vm264, %v223
  %353 = vst.msk [vmem:[%s1 + $0x160] sm:$0x7] %vm264, %v224
  %354 = vst.msk [vmem:[%s1 + $0x164] sm:$0x7] %vm264, %v225
  %355 = vst.msk [vmem:[%s1 + $0x168] sm:$0x7] %vm264, %v226
  %356 = vst.msk [vmem:[%s1 + $0x16c] sm:$0x7] %vm264, %v227
  %357 = vst.msk [vmem:[%s1 + $0x170] sm:$0x7] %vm264, %v228
  %358 = vst.msk [vmem:[%s1 + $0x174] sm:$0x7] %vm264, %v229
  %359 = vst.msk [vmem:[%s1 + $0x178] sm:$0x7] %vm264, %v230
  %360 = vst.msk [vmem:[%s1 + $0x17c] sm:$0x7] %vm264, %v231
  %361 = vst.msk [vmem:[%s1 + $0x180] sm:$0x7] %vm264, %v232
  %362 = vst.msk [vmem:[%s1 + $0x184] sm:$0x7] %vm264, %v233
  %363 = vst.msk [vmem:[%s1 + $0x188] sm:$0x7] %vm264, %v234
  %364 = vst.msk [vmem:[%s1 + $0x18c] sm:$0x7] %vm264, %v235
  %365 = vst.msk [vmem:[%s1 + $0x190] sm:$0x7] %vm264, %v236
  %366 = vst.msk [vmem:[%s1 + $0x194] sm:$0x7] %vm264, %v237
  %367 = vst.msk [vmem:[%s1 + $0x198] sm:$0x7] %vm264, %v238
  %368 = vst.msk [vmem:[%s1 + $0x19c] sm:$0x7] %vm264, %v239
  %369 = vst.msk [vmem:[%s1 + $0x1a0] sm:$0x7] %vm264, %v240
  %370 = vst.msk [vmem:[%s1 + $0x1a4] sm:$0x7] %vm264, %v241
  %371 = vst.msk [vmem:[%s1 + $0x1a8] sm:$0x7] %vm264, %v242
  %372 = vst.msk [vmem:[%s1 + $0x1ac] sm:$0x7] %vm264, %v243
  %373 = vst.msk [vmem:[%s1 + $0x1b0] sm:$0x7] %vm264, %v244
  %374 = vst.msk [vmem:[%s1 + $0x1b4] sm:$0x7] %vm264, %v245
  %375 = vst.msk [vmem:[%s1 + $0x1b8] sm:$0x7] %vm264, %v246
  %376 = vst.msk [vmem:[%s1 + $0x1bc] sm:$0x7] %vm264, %v247
  %377 = vst.msk [vmem:[%s1 + $0x1c0] sm:$0x7] %vm264, %v248
  %378 = vst.msk [vmem:[%s1 + $0x1c4] sm:$0x7] %vm264, %v249
  %379 = vst.msk [vmem:[%s1 + $0x1c8] sm:$0x7] %vm264, %v250
  %380 = vst.msk [vmem:[%s1 + $0x1cc] sm:$0x7] %vm264, %v251
  %381 = vst.msk [vmem:[%s1 + $0x1d0] sm:$0x7] %vm264, %v252
  %382 = vst.msk [vmem:[%s1 + $0x1d4] sm:$0x7] %vm264, %v253
  %383 = vst.msk [vmem:[%s1 + $0x1d8] sm:$0x7] %vm264, %v254
  %384 = vst.msk [vmem:[%s1 + $0x1dc] sm:$0x7] %vm264, %v255
  %385 = vst.msk [vmem:[%s1 + $0x1e0] sm:$0x7] %vm264, %v256
  %386 = vst.msk [vmem:[%s1 + $0x1e4] sm:$0x7] %vm264, %v257
  %387 = vst.msk [vmem:[%s1 + $0x1e8] sm:$0x7] %vm264, %v258
  %388 = vst.msk [vmem:[%s1 + $0x1ec] sm:$0x7] %vm264, %v259
  %389 = vst.msk [vmem:[%s1 + $0x1f0] sm:$0x7] %vm264, %v260
  %390 = vst.msk [vmem:[%s1 + $0x1f4] sm:$0x7] %vm264, %v261
  %391 = vst.msk [vmem:[%s1 + $0x1f8] sm:$0x7] %vm264, %v262
  %392 = vst.msk [vmem:[%s1 + $0x1fc] sm:$0x7] %vm264, %v263
  // Predicated region
  $region6: #{tpu_custom_call.1} parent=0 // pred_check
    _
  $region7: #{tpu_custom_call.1} parent=0 // pred_check_branch
    %394 = sbr.rel (0) target = $region9
  $region8: #{tpu_custom_call.1} parent=0 // pred_region
    _
  $region9: #{tpu_custom_call.1} parent=0 // pred_fallthru
    _
  // Predicated region
  $region10: #{tpu_custom_call.1} parent=0 // pred_check
    _
  $region11: #{tpu_custom_call.1} parent=0 // pred_check_branch
    %396 = sbr.rel (0) target = $region13
  $region12: #{tpu_custom_call.1} parent=0 // pred_region
    _
  $region13: #{tpu_custom_call.1} parent=0 // pred_fallthru
    _

</llo_original>
